<compile_context>
chip_gen: v7x
topology: tpu7x:2x2x1
jax: 0.10.0
libtpu: 0.0.40
codegen_flags: <defaults>
</compile_context>

<pallas_src>
import functools

import jax
import jax.numpy as jnp
from jax.experimental import pallas as pl
from jax.experimental.pallas import tpu as pltpu

SIGMA = 2.5
EPS = 0.01
GRAPH_HDIM = 128  # ProteinEncoder output width implied by top_net (128 * 2)


# ----------------------------------------------------------------------------
# helpers
# ----------------------------------------------------------------------------
def _round_up(x, m):
    return ((x + m - 1) // m) * m


def _row_tile(n, max_tile=256, min_tile=8):
    """8-aligned row tile: big enough to amortize the ~0.35us per-grid-step
    overhead, but keep >= 2 grid steps when possible (v7x has 2 TCs)."""
    if n >= 2 * max_tile:
        return max_tile
    return max(min_tile, min(max_tile, _round_up(pl.cdiv(n, 2), min_tile)))


# ----------------------------------------------------------------------------
# Pallas kernels
# ----------------------------------------------------------------------------
def _linear_relu_kernel(x_ref, w_ref, b_ref, o_ref):
    """o = relu(x @ w + b) for one row tile (encoder stub). bf16 in, f32 acc."""
    h = jnp.dot(x_ref[...], w_ref[...], preferred_element_type=jnp.float32)
    o_ref[...] = jnp.maximum(h + b_ref[...], 0.0).astype(o_ref.dtype)


def linear_relu(x, w_bf16, b_f32):
    n, kin = x.shape
    kout = w_bf16.shape[1]
    t = _row_tile(n)
    n_pad = _round_up(n, t)
    if n_pad != n:
        x = jnp.pad(x, ((0, n_pad - n), (0, 0)))
    out = pl.pallas_call(
        _linear_relu_kernel,
        out_shape=jax.ShapeDtypeStruct((n_pad, kout), jnp.bfloat16),
        grid=(n_pad // t,),
        in_specs=[
            pl.BlockSpec((t, kin), lambda i: (i, 0)),
            pl.BlockSpec((kin, kout), lambda i: (0, 0)),
            pl.BlockSpec((1, kout), lambda i: (0, 0)),
        ],
        out_specs=pl.BlockSpec((t, kout), lambda i: (i, 0)),
        compiler_params=pltpu.CompilerParams(dimension_semantics=("parallel",)),
    )(x.astype(jnp.bfloat16), w_bf16, b_f32.reshape(1, kout))
    return out[:n]


def _top_net_kernel(xl_ref, xr_ref, w1l_ref, w1r_ref, b1_ref, w2_ref, b2_ref, o_ref):
    """Fused top_net: Linear -> ReLU -> Dropout(p=0.25, identity in eval) -> Linear.

    The input concat is folded into two matmuls: x @ w1 == xl @ w1[:128] + xr @ w1[128:].
    The second Linear uses a zero-padded (f,128) weight so the output store is
    lane-dense; column 0 holds the real logit.
    """
    h = jnp.dot(xl_ref[...], w1l_ref[...], preferred_element_type=jnp.float32)
    h = h + jnp.dot(xr_ref[...], w1r_ref[...], preferred_element_type=jnp.float32)
    h = jnp.maximum(h + b1_ref[...], 0.0)
    # TODO(synk): Dropout(p=0.25) is identity at inference time (no train mode).
    o_ref[...] = (
        jnp.dot(h.astype(jnp.bfloat16), w2_ref[...], preferred_element_type=jnp.float32)
        + b2_ref[...]
    )


def top_net_pallas(xl, xr, w1l, w1r, b1, w2p, b2p):
    n, hdim = xl.shape
    f = b1.shape[-1]
    t = _row_tile(n)
    n_pad = _round_up(n, t)
    if n_pad != n:
        xl = jnp.pad(xl, ((0, n_pad - n), (0, 0)))
        xr = jnp.pad(xr, ((0, n_pad - n), (0, 0)))
    out = pl.pallas_call(
        _top_net_kernel,
        out_shape=jax.ShapeDtypeStruct((n_pad, 128), jnp.float32),
        grid=(n_pad // t,),
        in_specs=[
            pl.BlockSpec((t, hdim), lambda i: (i, 0)),
            pl.BlockSpec((t, hdim), lambda i: (i, 0)),
            pl.BlockSpec((hdim, f), lambda i: (0, 0)),
            pl.BlockSpec((hdim, f), lambda i: (0, 0)),
            pl.BlockSpec((1, f), lambda i: (0, 0)),
            pl.BlockSpec((f, 128), lambda i: (0, 0)),
            pl.BlockSpec((1, 128), lambda i: (0, 0)),
        ],
        out_specs=pl.BlockSpec((t, 128), lambda i: (i, 0)),
        compiler_params=pltpu.CompilerParams(dimension_semantics=("parallel",)),
    )(xl.astype(jnp.bfloat16), xr.astype(jnp.bfloat16), w1l, w1r, b1, w2p, b2p)
    return out[:n, :1]


def _rbf_kernel(p2_ref, p1t_ref, f1_ref, feats_ref, norms_ref, acc_ref, nrm_ref,
                *, sigma, eps):
    """torch_rbf, tiled: m ('parallel') x n ('arbitrary' reduction)."""
    j = pl.program_id(1)

    @pl.when(j == 0)
    def _():
        acc_ref[...] = jnp.zeros_like(acc_ref)
        nrm_ref[...] = jnp.zeros_like(nrm_ref)

    p2 = p2_ref[...]            # (m_tile, 3) f32
    p1t = p1t_ref[...]          # (3, n_tile) f32
    # K=3 squared distance on the VPU (no in-kernel transpose, MXU stays free).
    d2 = (
        (p2[:, 0:1] - p1t[0:1, :]) ** 2
        + (p2[:, 1:2] - p1t[1:2, :]) ** 2
        + (p2[:, 2:3] - p1t[2:3, :]) ** 2
    )
    w = jnp.exp(-jnp.sqrt(d2) / sigma)                     # (m_tile, n_tile)
    nrm_ref[...] += jnp.sum(w, axis=1, keepdims=True)      # (m_tile, 1)
    acc_ref[...] += jnp.dot(
        w.astype(jnp.bfloat16), f1_ref[...], preferred_element_type=jnp.float32
    )

    @pl.when(j == pl.num_programs(1) - 1)
    def _():
        norm = nrm_ref[...] + eps                          # (m_tile, 1)
        inv = pl.reciprocal(norm, approx=True)
        feats_ref[...] = acc_ref[...] * inv
        norms_ref[...] = jnp.broadcast_to(norm, norms_ref.shape)  # lane-dense


def torch_rbf_pallas(points_1, points_2, feats_1, sigma=SIGMA, eps=EPS,
                     concat=False, n_tile=512):
    """Project feats_1 living on points_1 (n,3) onto points_2 (m,3)."""
    n, k = feats_1.shape
    m = points_2.shape[0]

    # reduction-axis (n) tiling + padding: dummy points far away -> exp -> 0
    # NOTE(v7x): n_tile=512 with k=128 keeps double-buffered tiles well under
    # the 32 MiB scoped / 64 MiB physical VMEM budget; shrink if k grows.
    n_tile = min(n_tile, _round_up(n, 128))
    n_pad = _round_up(n, n_tile)
    m_tile = _row_tile(m)
    m_pad = _round_up(m, m_tile)

    p1 = jnp.pad(points_1, ((0, n_pad - n), (0, 0)), constant_values=1.0e6)
    p1t = p1.T                                            # (3, n_pad)
    f1 = jnp.pad(feats_1, ((0, n_pad - n), (0, 0))).astype(jnp.bfloat16)
    p2 = jnp.pad(points_2, ((0, m_pad - m), (0, 0)))

    feats_2, norms = pl.pallas_call(
        functools.partial(_rbf_kernel, sigma=sigma, eps=eps),
        out_shape=(
            jax.ShapeDtypeStruct((m_pad, k), jnp.float32),
            jax.ShapeDtypeStruct((m_pad, 128), jnp.float32),
        ),
        grid=(m_pad // m_tile, n_pad // n_tile),
        in_specs=[
            pl.BlockSpec((m_tile, 3), lambda i, j: (i, 0)),
            pl.BlockSpec((3, n_tile), lambda i, j: (0, j)),
            pl.BlockSpec((n_tile, k), lambda i, j: (j, 0)),
        ],
        out_specs=(
            pl.BlockSpec((m_tile, k), lambda i, j: (i, 0)),
            pl.BlockSpec((m_tile, 128), lambda i, j: (i, 0)),
        ),
        scratch_shapes=[
            pltpu.VMEM((m_tile, k), jnp.float32),
            pltpu.VMEM((m_tile, 1), jnp.float32),
        ],
        compiler_params=pltpu.CompilerParams(
            dimension_semantics=("parallel", "arbitrary")
        ),
    )(p2, p1t, f1)

    feats_2 = feats_2[:m]
    line_norms = norms[:m, 0]
    if concat:
        return jnp.concatenate([feats_2, jnp.tanh(line_norms)[:, None]], axis=1)
    return feats_2, line_norms


# ----------------------------------------------------------------------------
# PIPNet wrapper (parameters built deterministically in-script)
# ----------------------------------------------------------------------------
def _uniform_linear(key, fan_in, fan_out):
    # PyTorch nn.Linear default init: U(-1/sqrt(fan_in), 1/sqrt(fan_in))
    kw, kb = jax.random.split(key)
    lim = 1.0 / jnp.sqrt(float(fan_in))
    w = jax.random.uniform(kw, (fan_in, fan_out), jnp.float32, -lim, lim)
    b = jax.random.uniform(kb, (fan_out,), jnp.float32, -lim, lim)
    return w, b


class PIPNetPallas:
    def __init__(self, key, graph_in_dim, use_graph_only=True):
        self.sigma = SIGMA
        self.use_graph_only = use_graph_only
        k_enc, k_t1, k_t2 = jax.random.split(key, 3)

        # TODO(synk): ProteinEncoder definition is not provided; stubbed as a
        # single Linear(graph_in_dim -> 128) + ReLU implemented in Pallas.
        w_enc, b_enc = _uniform_linear(k_enc, graph_in_dim, GRAPH_HDIM)
        self.w_enc_f32, self.b_enc = w_enc, b_enc
        self.w_enc = w_enc.astype(jnp.bfloat16)

        in_features = GRAPH_HDIM * 2 if use_graph_only else GRAPH_HDIM * 2 + 129 * 2
        w1, b1 = _uniform_linear(k_t1, in_features, in_features)
        w2, b2 = _uniform_linear(k_t2, in_features, 1)
        self.w1_f32, self.b1_f32 = w1, b1
        self.w2_f32, self.b2_f32 = w2, b2

        # kernel-side parameter layouts (bf16 MXU operands, lane-dense output)
        self.w1l = w1[:GRAPH_HDIM].astype(jnp.bfloat16)
        self.w1r = w1[GRAPH_HDIM:].astype(jnp.bfloat16)
        self.b1 = b1.reshape(1, in_features)
        w2p = jnp.zeros((in_features, 128), jnp.float32).at[:, 0].set(w2[:, 0])
        self.w2p = w2p.astype(jnp.bfloat16)
        self.b2p = jnp.zeros((1, 128), jnp.float32).at[0, 0].set(b2[0])

    def encode_graphs(self, x1, x2):
        # one fused pallas_call for both graphs (row-stacked)
        n1 = x1.shape[0]
        enc = linear_relu(jnp.concatenate([x1, x2], axis=0), self.w_enc, self.b_enc)
        return enc[:n1], enc[n1:]

    def forward(self, batch):
        graph_1_x, graph_2_x = self.encode_graphs(batch["graph_1_x"], batch["graph_2_x"])

        # index bookkeeping (glue, matches the torch loop over idx lists)
        base_l = jnp.cumsum(batch["g1_len"])
        base_r = jnp.cumsum(batch["g2_len"])
        idx_left = [batch["idx_left"][0]]
        idx_right = [batch["idx_right"][0]]
        for i in range(1, len(batch["idx_left"])):
            idx_left.append(batch["idx_left"][i] + base_l[i - 1])
            idx_right.append(batch["idx_right"][i] + base_r[i - 1])
        idx_left = jnp.concatenate(idx_left)
        idx_right = jnp.concatenate(idx_right)

        # TODO(synk): gather kept in XLA; an in-kernel scalar-prefetch DMA
        # gather (PrefetchScalarGridSpec + pl.Element rows) would force 1-row
        # grid steps here, so the (tiny) gathered tensors are materialized.
        processed_left = graph_1_x[idx_left]
        processed_right = graph_2_x[idx_right]

        if self.use_graph_only:
            return top_net_pallas(
                processed_left, processed_right,
                self.w1l, self.w1r, self.b1, self.w2p, self.b2p,
            )
        # TODO(synk): the reference non-graph branch calls
        # `self.top_net([...], dim=1)` which is a bug in the original torch
        # code (nn.Sequential takes a tensor, no dim kwarg); not translated.
        raise NotImplementedError

    # TODO(synk): project_processed_surface (cdist + topk + unique) is unused by
    # the graph-only forward; unique() is dynamic-shape and left untranslated.


# ----------------------------------------------------------------------------
# main
# ----------------------------------------------------------------------------
if __name__ == "__main__":
    key = jax.random.PRNGKey(0)
    k_model, k_g1, k_g2, k_i1, k_i2, k_v, k_l, k_f = jax.random.split(key, 8)

    # small synthetic "batch": 2 protein pairs, 32 graph nodes each, 16-d input
    nodes_per_graph, graph_in_dim, pairs_per_ex = 32, 16, 8
    batch = {
        "graph_1_x": jax.random.normal(k_g1, (2 * nodes_per_graph, graph_in_dim), jnp.float32),
        "graph_2_x": jax.random.normal(k_g2, (2 * nodes_per_graph, graph_in_dim), jnp.float32),
        "g1_len": jnp.array([nodes_per_graph, nodes_per_graph], jnp.int32),
        "g2_len": jnp.array([nodes_per_graph, nodes_per_graph], jnp.int32),
        "idx_left": [
            jax.random.randint(k_i1, (pairs_per_ex,), 0, nodes_per_graph),
            jax.random.randint(k_i2, (pairs_per_ex,), 0, nodes_per_graph),
        ],
        "idx_right": [
            jax.random.randint(k_i2, (pairs_per_ex,), 0, nodes_per_graph),
            jax.random.randint(k_i1, (pairs_per_ex,), 0, nodes_per_graph),
        ],
    }

    model = PIPNetPallas(k_model, graph_in_dim, use_graph_only=True)
    out = jax.block_until_ready(model.forward(batch))
    assert out.shape == (2 * pairs_per_ex, 1)

    # pure-JAX f32 reference for the forward pass (kernel uses bf16 MXU inputs)
    def ref_forward(b):
        g1 = jnp.maximum(b["graph_1_x"] @ model.w_enc_f32 + model.b_enc, 0.0)
        g2 = jnp.maximum(b["graph_2_x"] @ model.w_enc_f32 + model.b_enc, 0.0)
        il = jnp.concatenate([b["idx_left"][0], b["idx_left"][1] + jnp.cumsum(b["g1_len"])[0]])
        ir = jnp.concatenate([b["idx_right"][0], b["idx_right"][1] + jnp.cumsum(b["g2_len"])[0]])
        x = jnp.concatenate([g1[il], g2[ir]], axis=1)
        h = jnp.maximum(x @ model.w1_f32 + model.b1_f32, 0.0)
        return h @ model.w2_f32 + model.b2_f32

    ref = ref_forward(batch)
    assert jnp.allclose(out, ref, atol=2e-2, rtol=2e-2), "top_net mismatch"

    # exercise the torch_rbf kernel (used by the non-graph-only branch)
    verts = jax.random.normal(k_v, (64, 3), jnp.float32)           # surface.verts (n,3)
    locs = jax.random.normal(k_l, (24, 3), jnp.float32)            # cat(locs_left) (m,3)
    sfeat = jax.random.normal(k_f, (64, GRAPH_HDIM), jnp.float32)  # surface.x (n,128)
    rbf_out = jax.block_until_ready(
        torch_rbf_pallas(verts, locs, sfeat, sigma=SIGMA, concat=True)
    )
    assert rbf_out.shape == (24, GRAPH_HDIM + 1)

    d_ref = jnp.sqrt(jnp.maximum(
        jnp.sum((locs[:, None, :] - verts[None, :, :]) ** 2, -1), 0.0))
    w_ref = jnp.exp(-d_ref / SIGMA)
    n_ref = jnp.sum(w_ref, axis=1) + EPS
    rbf_ref = jnp.concatenate(
        [(w_ref / n_ref[:, None]) @ sfeat, jnp.tanh(n_ref)[:, None]], axis=1)
    assert jnp.allclose(rbf_out, rbf_ref, atol=2e-2, rtol=2e-2), "rbf mismatch"

    # also exercise the non-concat return path
    f2, ln = torch_rbf_pallas(verts, locs, sfeat, sigma=SIGMA, concat=False)
    jax.block_until_ready((f2, ln))
    assert f2.shape == (24, GRAPH_HDIM) and ln.shape == (24,)

    print("KERNEL_OK")
</pallas_src>

<mosaic_0001>
module attributes {stable_mosaic.version = 11 : i64} {
  func.func @_linear_relu_kernel(%arg0: i32, %arg1: memref<64x16xbf16, #tpu.memory_space<vmem>>, %arg2: memref<16x128xbf16, #tpu.memory_space<vmem>>, %arg3: memref<1x128xf32, #tpu.memory_space<vmem>>, %arg4: memref<64x128xbf16, #tpu.memory_space<vmem>>) attributes {dimension_semantics = [#tpu.dimension_semantics<parallel>], iteration_bounds = array<i64: 2>, scalar_prefetch = 0 : i64, scratch_operands = 0 : i64, tpu.core_type = #tpu.core_type<tc>, window_params = [{transform_indices = @transform_0, window_bounds = array<i64: 64, 16>}, {pipeline_mode = #tpu.pipeline_mode<synchronous>, transform_indices = @transform_1, window_bounds = array<i64: 16, 128>}, {pipeline_mode = #tpu.pipeline_mode<synchronous>, transform_indices = @transform_2, window_bounds = array<i64: 1, 128>}, {transform_indices = @transform_3, window_bounds = array<i64: 64, 128>}]} {
    %c0 = arith.constant 0 : index
    %c0_0 = arith.constant 0 : index
    %0 = vector.load %arg1[%c0, %c0_0] : memref<64x16xbf16, #tpu.memory_space<vmem>>, vector<64x16xbf16>
    %c0_1 = arith.constant 0 : index
    %c0_2 = arith.constant 0 : index
    %1 = vector.load %arg2[%c0_1, %c0_2] : memref<16x128xbf16, #tpu.memory_space<vmem>>, vector<16x128xbf16>
    %cst = arith.constant dense<0.000000e+00> : vector<64x128xf32>
    %2 = tpu.matmul %0, %1, %cst {dimension_numbers = #tpu.dot_dimension_numbers<[1], [0], [0], [1], [0, 0, 1, 1], [], []>} : vector<64x16xbf16>, vector<16x128xbf16>, vector<64x128xf32> -> vector<64x128xf32>
    %c0_3 = arith.constant 0 : index
    %c0_4 = arith.constant 0 : index
    %3 = vector.load %arg3[%c0_3, %c0_4] : memref<1x128xf32, #tpu.memory_space<vmem>>, vector<1x128xf32>
    %4 = vector.broadcast %3 : vector<1x128xf32> to vector<64x128xf32>
    %5 = arith.addf %2, %4 : vector<64x128xf32>
    %cst_5 = arith.constant 0.000000e+00 : f32
    %6 = vector.broadcast %cst_5 : f32 to vector<64x128xf32>
    %7 = arith.maximumf %5, %6 : vector<64x128xf32>
    %8 = arith.truncf %7 : vector<64x128xf32> to vector<64x128xbf16>
    %c0_6 = arith.constant 0 : index
    %c0_7 = arith.constant 0 : index
    %9 = vector.load %arg4[%c0_6, %c0_7] : memref<64x128xbf16, #tpu.memory_space<vmem>>, vector<64x128xbf16>
    tpu.vector_store %arg4[%c0_6, %c0_7], %8 {strides = array<i32>} : memref<64x128xbf16, #tpu.memory_space<vmem>>, vector<64x128xbf16>,
    return
  }
  func.func @transform_0(%arg0: i32) -> (i32, i32) {
    %c0_i32 = arith.constant 0 : i32
    %c0_i32_0 = arith.constant 0 : i32
    return %arg0, %c0_i32 : i32, i32
  }
  func.func @transform_1(%arg0: i32) -> (i32, i32) {
    %c0_i32 = arith.constant 0 : i32
    %c0_i32_0 = arith.constant 0 : i32
    %c0_i32_1 = arith.constant 0 : i32
    return %c0_i32, %c0_i32_0 : i32, i32
  }
  func.func @transform_2(%arg0: i32) -> (i32, i32) {
    %c0_i32 = arith.constant 0 : i32
    %c0_i32_0 = arith.constant 0 : i32
    %c0_i32_1 = arith.constant 0 : i32
    return %c0_i32, %c0_i32_0 : i32, i32
  }
  func.func @transform_3(%arg0: i32) -> (i32, i32) {
    %c0_i32 = arith.constant 0 : i32
    %c0_i32_0 = arith.constant 0 : i32
    return %arg0, %c0_i32 : i32, i32
  }
}

</mosaic_0001>

<llo_original>
// kernel: tpu_custom_call.1
$region0: #{tpu_custom_call.1}
  #allocation0 [shape = 'u32[]', space=smem, size = 0x4, offset = 0x4, fixed_abs, tag = 'smem constant byte address 0x4 - core index']
  #allocation1 [shape = 'u32[144,128]{1,0:T(1,128)}', space=vmem, size = 0x12000, scoped, tag = 'internal scratch']
  %s0 = inlined_call_operand.vmem [shape: bf16[128,16], index: 0, kind: input, shape index: {}]
  %s1 = inlined_call_operand.vmem [shape: bf16[16,128], index: 1, kind: input, shape index: {}]
  %s2 = inlined_call_operand.vmem [shape: f32[1,128], index: 2, kind: input, shape index: {}]
  %s3 = inlined_call_operand.hbm [shape: bf16[128,128], index: 3, kind: output, shape index: {}]
  %s4 = sld [smem:[#allocation0]]
  $region45: #{tpu_custom_call.1} parent=0
    _
  %s6 = ssub.s32 1, %s4
  %s7 = scalar_select 0, %s6, %s4
  $region1: #{tpu_custom_call.1} parent=0
    #allocation2 [shape = 'u8[32768]{0}', space=vmem, size = 0x8000, scoped, tag = 'output window, operand 0']
    #allocation3 [shape = 's32[2]{0}', space=sflag, size = 0x8, scoped, tag = 'scoped memory for tpu_custom_call.1']
    %8 = vsyncpa [#allocation3], 0
    %s9 = scalar_lea.sflag [#allocation3], 1
    %10 = vsyncpa %s9, 0
    loop: start=0, step=1, limit=4
    $region2: #{tpu_custom_call.1} parent=1 // loop_pre_header
      _
    $region3: #{tpu_custom_call.1} parent=1 // loop_header
      %s12 = sphi 0, %s16
      %p13 = scmp.ge.s32.totalorder %s12, 4
      %s22 = sphi 0, %s24
      %s25 = sphi 0, %s22
      %s26 = sphi 0, %s25
      %s42 = sphi 0, %s26
      %s46 = sphi 0, %s46
      %s48 = sphi 0, %s46
      %s49 = sphi 0, %s48
      %s63 = sphi 0, %s49
      %s67 = sphi 0, %s67
      %s69 = sphi 0, %s67
      %s70 = sphi 0, %s69
      %s84 = sphi 0, %s70
      %s90 = sphi 0, %s92
      %s93 = sphi 0, %s90
      %s94 = sphi 0, %s93
      %s110 = sphi 0, %s94
    $region4: #{tpu_custom_call.1} parent=1 // loop_header_branch
      %15 = sbr.rel (%p13) target = $region8
    $region5: #{tpu_custom_call.1} parent=1 // loop_body
      %s17 = ssub.s32 %s12, 1
      %s18 = ssub.s32 %s12, 2
      %s19 = sadd.s32 %s12, 1
      %s20 = ssub.s32 %s12, %s19
      %p21 = scmp.eq.s32.totalorder %s20, 0
      %s23 = sadd.s32 %s22, 1
      %s24 = scalar_select %p21, %s22, %s23
      %p27 = pneg %p21
      %p28 = scmp.eq.s32.totalorder %s12, 1
      %p29 = por %p27, %p28
      %p30 = scmp.ne.s32.totalorder %s22, %s25
      %p31 = scmp.eq.s32.totalorder %s12, 0
      %p32 = por %p30, %p31
      %p33 = scmp.ne.s32.totalorder %s22, %s25
      %p34 = scmp.eq.s32.totalorder %s17, 1
      %p35 = por %p33, %p34
      %p36 = scmp.ne.s32.totalorder %s25, %s26
      %p37 = scmp.eq.s32.totalorder %s17, 0
      %p38 = por %p36, %p37
      %p39 = scmp.ne.s32.totalorder %s25, %s26
      %p40 = scmp.eq.s32.totalorder %s18, 1
      %p41 = por %p39, %p40
      %p43 = scmp.ne.s32.totalorder %s26, %s42
      %p44 = scmp.eq.s32.totalorder %s18, 0
      %p45 = por %p43, %p44
      %s47 = sadd.s32 %s46, 1
      %p50 = scmp.eq.s32.totalorder %s12, 1
      %p51 = scmp.ne.s32.totalorder %s46, %s48
      %p52 = scmp.eq.s32.totalorder %s12, 0
      %p53 = por %p51, %p52
      %p54 = scmp.ne.s32.totalorder %s46, %s48
      %p55 = scmp.eq.s32.totalorder %s17, 1
      %p56 = por %p54, %p55
      %p57 = scmp.ne.s32.totalorder %s48, %s49
      %p58 = scmp.eq.s32.totalorder %s17, 0
      %p59 = por %p57, %p58
      %p60 = scmp.ne.s32.totalorder %s48, %s49
      %p61 = scmp.eq.s32.totalorder %s18, 1
      %p62 = por %p60, %p61
      %p64 = scmp.ne.s32.totalorder %s49, %s63
      %p65 = scmp.eq.s32.totalorder %s18, 0
      %p66 = por %p64, %p65
      %s68 = sadd.s32 %s67, 1
      %p71 = scmp.eq.s32.totalorder %s12, 1
      %p72 = scmp.ne.s32.totalorder %s67, %s69
      %p73 = scmp.eq.s32.totalorder %s12, 0
      %p74 = por %p72, %p73
      %p75 = scmp.ne.s32.totalorder %s67, %s69
      %p76 = scmp.eq.s32.totalorder %s17, 1
      %p77 = por %p75, %p76
      %p78 = scmp.ne.s32.totalorder %s69, %s70
      %p79 = scmp.eq.s32.totalorder %s17, 0
      %p80 = por %p78, %p79
      %p81 = scmp.ne.s32.totalorder %s69, %s70
      %p82 = scmp.eq.s32.totalorder %s18, 1
      %p83 = por %p81, %p82
      %p85 = scmp.ne.s32.totalorder %s70, %s84
      %p86 = scmp.eq.s32.totalorder %s18, 0
      %p87 = por %p85, %p86
      %s88 = ssub.s32 %s12, %s19
      %p89 = scmp.eq.s32.totalorder %s88, 0
      %s91 = sadd.s32 %s90, 1
      %s92 = scalar_select %p89, %s90, %s91
      %p95 = pneg %p89
      %p96 = scmp.eq.s32.totalorder %s12, 1
      %p97 = por %p95, %p96
      %p98 = scmp.ne.s32.totalorder %s90, %s93
      %p99 = scmp.eq.s32.totalorder %s12, 0
      %p100 = por %p98, %p99
      %p101 = scmp.ne.s32.totalorder %s90, %s93
      %p102 = scmp.eq.s32.totalorder %s17, 1
      %p103 = por %p101, %p102
      %p104 = scmp.ne.s32.totalorder %s93, %s94
      %p105 = scmp.eq.s32.totalorder %s17, 0
      %p106 = por %p104, %p105
      %p107 = scmp.ne.s32.totalorder %s93, %s94
      %p108 = scmp.eq.s32.totalorder %s18, 1
      %p109 = por %p107, %p108
      %p111 = scmp.ne.s32.totalorder %s94, %s110
      %p112 = scmp.eq.s32.totalorder %s18, 0
      %p113 = por %p111, %p112
      %p114 = scmp.le.s32.totalorder 1, %s12
      %p115 = scmp.lt.s32.totalorder %s12, 3
      %p116 = pnand %p114, %p115
      %p117 = pneg %p116
      // Predicated region
      $region9: #{tpu_custom_call.1} parent=5 // pred_check
        _
      $region10: #{tpu_custom_call.1} parent=5 // pred_check_branch
        %119 = sbr.rel (%p116) target = $region12
      $region11: #{tpu_custom_call.1} parent=5 // pred_region
        %s120 = ssub.s32 %s12, 1
        // Predicated region
        $region13: #{tpu_custom_call.1} parent=11 // pred_check
          %p121 = pneg %p59
        $region14: #{tpu_custom_call.1} parent=11 // pred_check_branch
          %123 = sbr.rel (%p121) target = $region16
        $region15: #{tpu_custom_call.1} parent=11 // pred_region
          _
        $region16: #{tpu_custom_call.1} parent=11 // pred_fallthru
          _
        // Predicated region
        $region17: #{tpu_custom_call.1} parent=11 // pred_check
          %p124 = pneg %p80
        $region18: #{tpu_custom_call.1} parent=11 // pred_check_branch
          %126 = sbr.rel (%p124) target = $region20
        $region19: #{tpu_custom_call.1} parent=11 // pred_region
          _
        $region20: #{tpu_custom_call.1} parent=11 // pred_fallthru
          _
      $region12: #{tpu_custom_call.1} parent=5 // pred_fallthru
        _
      %p127 = scmp.lt.s32.totalorder %s12, 2
      // Predicated region
      $region21: #{tpu_custom_call.1} parent=5 // pred_check
        %p128 = pneg %p127
      $region22: #{tpu_custom_call.1} parent=5 // pred_check_branch
        %130 = sbr.rel (%p128) target = $region24
      $region23: #{tpu_custom_call.1} parent=5 // pred_region
        // Predicated region
        $region25: #{tpu_custom_call.1} parent=23 // pred_check
          %p131 = pneg %p32
        $region26: #{tpu_custom_call.1} parent=23 // pred_check_branch
          %133 = sbr.rel (%p131) target = $region28
        $region27: #{tpu_custom_call.1} parent=23 // pred_region
          %s134 = smul.u32 8, %s12
          %p135 = scmp.lt.s32.totalorder %s134, 15
          %s136 = scalar_select %p135, %s134, 15
          %s137 = smul.addr %s136, 4
          %s138 = scalar_lea.vmem %s0, %s137
          %s139 = smul.u32 8, %s12
        $region28: #{tpu_custom_call.1} parent=23 // pred_fallthru
          _
      $region24: #{tpu_custom_call.1} parent=5 // pred_fallthru
        _
      %p140 = scmp.le.s32.totalorder 1, %s12
      %p141 = scmp.lt.s32.totalorder %s12, 3
      %p142 = pnand %p140, %p141
      %p143 = pneg %p142
      // Predicated region
      $region29: #{tpu_custom_call.1} parent=5 // pred_check
        _
      $region30: #{tpu_custom_call.1} parent=5 // pred_check_branch
        %145 = sbr.rel (%p142) target = $region32
      $region31: #{tpu_custom_call.1} parent=5 // pred_region
        %s146 = ssub.s32 %s12, 1
        %s147 = smul.u32 8, %s17
        %p148 = scmp.lt.s32.totalorder %s147, 15
        %s149 = scalar_select %p148, %s147, 15
        %s150 = smul.addr %s149, 4
        %s151 = scalar_lea.vmem %s0, %s150
        %p152 = pneg %p38
        %p153 = pneg %p35
        %p154 = pneg %p59
        %p155 = pneg %p56
        %p156 = pneg %p80
        %p157 = pneg %p77
        %p158 = pneg %p106
        %p159 = pneg %p103
        %s160 = sand.u32 %s93, 1
        %s161 = scalar_lea.sflag [#allocation3], %s160
        %s162 = sand.u32 %s93, 1
        %s163 = smul.addr %s162, 32
        %s164 = scalar_lea.vmem [#allocation2], %s163
        %s165 = smul.u32 8, %s17
        %p166 = scmp.lt.s32.totalorder %s165, 15
        %s167 = scalar_select %p166, %s165, 15
        %s168 = smul.addr %s167, 4
        %s169 = scalar_lea.vmem %s0, %s168
        %s170 = smul.u32 8, %s17
        %s171 = smul.u32 8, %s17
        %v173 = vld [vmem:[%s169] sm:$0xf]
        %v174 = vld [vmem:[%s169 + $0x4] sm:$0xf]
        %v175 = vld [vmem:[%s169 + $0x8] sm:$0xf]
        %v176 = vld [vmem:[%s169 + $0xc] sm:$0xf]
        %v177 = vld [vmem:[%s169 + $0x10] sm:$0xf]
        %v178 = vld [vmem:[%s169 + $0x14] sm:$0xf]
        %v179 = vld [vmem:[%s169 + $0x18] sm:$0xf]
        %v180 = vld [vmem:[%s169 + $0x1c] sm:$0xf]
        %v181 = vld [vmem:[%s1] sm:$0xf]
        %v182 = vld [vmem:[%s1 + $0x4] sm:$0xf]
        %v183 = vld [vmem:[%s2] sm:$0x1]
        %v185 = vlaneseq
        %v186 = vshrl.u32 %v185, 7
        %v187 = vsub.s32 0, %v186
        %v188 = vrot.slane %v183, %v187
        %v198 = vunpack.c.l.b16 %v173
        %v199 = vunpack.c.l.b16 %v174
        %v200 = vunpack.c.l.b16 %v175
        %v201 = vunpack.c.l.b16 %v176
        %v202 = vunpack.c.l.b16 %v177
        %v203 = vunpack.c.l.b16 %v178
        %v204 = vunpack.c.l.b16 %v179
        %v205 = vunpack.c.l.b16 %v180
        %v206 = vpack.c.b16 %v199, %v198
        %v207 = vpack.c.b16 %v201, %v200
        %v208 = vpack.c.b16 %v203, %v202
        %v209 = vpack.c.b16 %v205, %v204
        %v212 = vunpack.c.l.b16 %v181
        %v213 = vunpack.c.l.b16 %v182
        %v214 = vpack.c.b16 %v213, %v212
        %vm216 = vcmask 130048
        %v218 = vsel %vm216, %v206, 0
        %v221 = vsel %vm216, %v207, 0
        %v224 = vsel %vm216, %v208, 0
        %v227 = vsel %vm216, %v209, 0
        %229 = vmatprep.subr.bf16.mxu0 0
        %230 = vmatpush1.bf16.msra.mxu0 %v214
        %231 = vmatprep.subr.bf16.mxu0 0
        %232 = vmatpush1.bf16.msra.mxu0 0
        %233 = vmatprep.subr.bf16.mxu0 0
        %234 = vmatpush1.bf16.msra.mxu0 0
        %235 = vmatprep.subr.bf16.mxu0 0
        %236 = vmatpush1.bf16.msra.mxu0 0
        %237 = vmatprep.subr.bf16.mxu0 0
        %238 = vmatpush1.bf16.msra.mxu0 0
        %239 = vmatprep.subr.bf16.mxu0 0
        %240 = vmatpush1.bf16.msra.mxu0 0
        %241 = vmatprep.subr.bf16.mxu0 0
        %242 = vmatpush1.bf16.msra.mxu0 0
        %243 = vmatprep.subr.bf16.mxu0 0
        %244 = vmatpush1.bf16.msra.mxu0 0
        %245 = vmatprep.subr.bf16.mxu0 0
        %246 = vmatpush1.bf16.msra.mxu0 0
        %247 = vmatprep.subr.bf16.mxu0 0
        %248 = vmatpush1.bf16.msra.mxu0 0
        %249 = vmatprep.subr.bf16.mxu0 0
        %250 = vmatpush1.bf16.msra.mxu0 0
        %251 = vmatprep.subr.bf16.mxu0 0
        %252 = vmatpush1.bf16.msra.mxu0 0
        %253 = vmatprep.subr.bf16.mxu0 0
        %254 = vmatpush1.bf16.msra.mxu0 0
        %255 = vmatprep.subr.bf16.mxu0 0
        %256 = vmatpush1.bf16.msra.mxu0 0
        %257 = vmatprep.subr.bf16.mxu0 0
        %258 = vmatpush1.bf16.msra.mxu0 0
        %259 = vmatprep.subr.bf16.mxu0 0
        %260 = vmatpush1.bf16.msra.mxu0 0
        %261 = vmatprep.mubr.bf16.mxu0 0
        %262 = vmatmul.mubr.bf16.gmra.mrb[0].mxu0 %v218
        %v263 = vpop.f32.mrb[0].mxu0
        %v264 = vadd.f32 %v188, %v263
        %v265 = vpop.f32.mrb[0].mxu0
        %v266 = vpop.f32.mrb[0].mxu0
        %v267 = vadd.f32 %v188, %v266
        %v268 = vpop.f32.mrb[0].mxu0
        %269 = vmatprep.mubr.bf16.mxu0 0
        %270 = vmatmul.mubr.bf16.gmra.mrb[0].mxu0 %v221
        %v271 = vpop.f32.mrb[0].mxu0
        %v272 = vadd.f32 %v188, %v271
        %v273 = vpop.f32.mrb[0].mxu0
        %v274 = vpop.f32.mrb[0].mxu0
        %v275 = vadd.f32 %v188, %v274
        %v276 = vpop.f32.mrb[0].mxu0
        %277 = vmatprep.mubr.bf16.mxu0 0
        %278 = vmatmul.mubr.bf16.gmra.mrb[0].mxu0 %v224
        %v279 = vpop.f32.mrb[0].mxu0
        %v280 = vadd.f32 %v188, %v279
        %v281 = vpop.f32.mrb[0].mxu0
        %v282 = vpop.f32.mrb[0].mxu0
        %v283 = vadd.f32 %v188, %v282
        %v284 = vpop.f32.mrb[0].mxu0
        %285 = vmatprep.mubr.bf16.mxu0 0
        %286 = vmatmul.mubr.bf16.gmra.mrb[0].mxu0 %v227
        %v287 = vpop.f32.mrb[0].mxu0
        %v288 = vadd.f32 %v188, %v287
        %v289 = vpop.f32.mrb[0].mxu0
        %v290 = vpop.f32.mrb[0].mxu0
        %v291 = vadd.f32 %v188, %v290
        %v292 = vpop.f32.mrb[0].mxu0
        %293 = vdwg.mxu0
        %v294 = vmax.f32 %v264, 0.0
        %v295 = vmax.f32 %v267, 0.0
        %v296 = vmax.f32 %v272, 0.0
        %v297 = vmax.f32 %v275, 0.0
        %v298 = vmax.f32 %v280, 0.0
        %v299 = vmax.f32 %v283, 0.0
        %v300 = vmax.f32 %v288, 0.0
        %v301 = vmax.f32 %v291, 0.0
        %v302 = vpack.c.bf16 %v295, %v294
        %v303 = vpack.c.bf16 %v297, %v296
        %v304 = vpack.c.bf16 %v299, %v298
        %v305 = vpack.c.bf16 %v301, %v300
        %v310 = vunpack.c.l.b16 %v302
        %v311 = vunpack.c.h.b16 %v302
        %v312 = vunpack.c.l.b16 %v303
        %v313 = vunpack.c.h.b16 %v303
        %v314 = vunpack.c.l.b16 %v304
        %v315 = vunpack.c.h.b16 %v304
        %v316 = vunpack.c.l.b16 %v305
        %v317 = vunpack.c.h.b16 %v305
        %v318 = vpack.c.b16 %v310, %v310
        %v319 = vpack.c.b16 %v311, %v311
        %v320 = vpack.c.b16 %v312, %v312
        %v321 = vpack.c.b16 %v313, %v313
        %v322 = vpack.c.b16 %v314, %v314
        %v323 = vpack.c.b16 %v315, %v315
        %v324 = vpack.c.b16 %v316, %v316
        %v325 = vpack.c.b16 %v317, %v317
        %334 = vst [vmem:[%s164] sm:$0xf] %v318
        %335 = vst [vmem:[%s164 + $0x4] sm:$0xf] %v319
        %336 = vst [vmem:[%s164 + $0x8] sm:$0xf] %v320
        %337 = vst [vmem:[%s164 + $0xc] sm:$0xf] %v321
        %338 = vst [vmem:[%s164 + $0x10] sm:$0xf] %v322
        %339 = vst [vmem:[%s164 + $0x14] sm:$0xf] %v323
        %340 = vst [vmem:[%s164 + $0x18] sm:$0xf] %v324
        %341 = vst [vmem:[%s164 + $0x1c] sm:$0xf] %v325
        %s342 = sand.u32 %s93, 1
        %s343 = scalar_lea.sflag [#allocation3], %s342
        %s344 = sand.u32 %s93, 1
        %s345 = smul.addr %s344, 32
        %s346 = scalar_lea.vmem [#allocation2], %s345
        // Predicated region
        $region33: #{tpu_custom_call.1} parent=31 // pred_check
          %p347 = pneg %p103
        $region34: #{tpu_custom_call.1} parent=31 // pred_check_branch
          %349 = sbr.rel (%p347) target = $region36
        $region35: #{tpu_custom_call.1} parent=31 // pred_region
          %s350 = smul.u32 8, %s17
          %s352 = ssub.s32 512, 512
          %353 = vsyncadd %s343, %s352
          %s354 = smul.addr %s350, 64
          %s355 = scalar_lea.hbm %s3, %s354
          %s356 = sshll.u32 %s346, 4
          %s357 = int_to_ptr.vmem [resolvable:$true] %s356
          %362 = dma.vmem_to_hbm [thread:$0]  %s357, 512, %s355, %s343, 64, 64, 4
        $region36: #{tpu_custom_call.1} parent=31 // pred_fallthru
          _
      $region32: #{tpu_custom_call.1} parent=5 // pred_fallthru
        _
      %p363 = scmp.le.s32.totalorder 2, %s12
      // Predicated region
      $region37: #{tpu_custom_call.1} parent=5 // pred_check
        %p364 = pneg %p363
      $region38: #{tpu_custom_call.1} parent=5 // pred_check_branch
        %366 = sbr.rel (%p364) target = $region40
      $region39: #{tpu_custom_call.1} parent=5 // pred_region
        %s367 = ssub.s32 %s12, 2
        // Predicated region
        $region41: #{tpu_custom_call.1} parent=39 // pred_check
          %p368 = pneg %p109
        $region42: #{tpu_custom_call.1} parent=39 // pred_check_branch
          %370 = sbr.rel (%p368) target = $region44
        $region43: #{tpu_custom_call.1} parent=39 // pred_region
          %s371 = sand.u32 %s94, 1
          %s372 = scalar_lea.sflag [#allocation3], %s371
          %s373 = sand.u32 %s94, 1
          %s374 = smul.addr %s373, 32
          %s375 = scalar_lea.vmem [#allocation2], %s374
          %376 = dma.done %s372, 512
        $region44: #{tpu_custom_call.1} parent=39 // pred_fallthru
          _
      $region40: #{tpu_custom_call.1} parent=5 // pred_fallthru
        _
    $region6: #{tpu_custom_call.1} parent=1 // loop_footer
      %s16 = sadd.s32 1, %s12
    $region7: #{tpu_custom_call.1} parent=1 // loop_footer_branch
      %11 = sbr.rel target = $region3
    $region8: #{tpu_custom_call.1} parent=1 // loop_exit
      _
    %377 = vsyncpa [#allocation3], 1
    %s378 = scalar_lea.sflag [#allocation3], 1
    %379 = vsyncpa %s378, 1

</llo_original>
